<compile_context>
chip_gen: v5e
topology: v5e:2x2
jax: 0.10.0
libtpu: 0.0.40
codegen_flags: <defaults>
</compile_context>

<pallas_src>
import functools
import math

import jax
import jax.numpy as jnp
from jax.experimental import pallas as pl
from jax.experimental.pallas import tpu as pltpu


def _round_up(n, m):
    return ((n + m - 1) // m) * m


def _residual_block_kernel(x_ref, g1_ref, bn1_ref, w1_ref, b1_ref,
                           g2_ref, bn2_ref, w2_ref, b2_ref, o_ref,
                           *, true_dim, eps):
    # x_ref: (TILE_B, D_pad); weights: (D_pad, D_pad); vectors: (1, D_pad)
    x = x_ref[...].astype(jnp.float32)

    lane = jax.lax.broadcasted_iota(jnp.int32, x.shape, 1)
    mask = lane < true_dim                       # valid feature lanes
    inv_d = jnp.float32(1.0 / true_dim)
    eps_f = jnp.float32(eps)

    def layer_norm(h, g_ref, b_ref):
        # Masked LayerNorm over the true (unpadded) feature dim; padded lanes -> 0
        # because gamma/beta are zero-padded.
        hm = jnp.where(mask, h, 0.0)
        mean = jnp.sum(hm, axis=-1, keepdims=True) * inv_d
        cent = jnp.where(mask, h - mean, 0.0)
        var = jnp.sum(cent * cent, axis=-1, keepdims=True) * inv_d
        return cent * jax.lax.rsqrt(var + eps_f) * g_ref[...] + b_ref[...]

    def silu(h):
        # SiLU = x * sigmoid(x); exp goes to the EUP slot (free next to VALU work).
        return h * (1.0 / (1.0 + jnp.exp(-h)))

    # net(x) = LN -> Linear -> SiLU -> LN -> Linear
    h = layer_norm(x, g1_ref, bn1_ref)
    h = jnp.dot(h.astype(w1_ref.dtype), w1_ref[...],
                preferred_element_type=jnp.float32) + b1_ref[...]
    h = silu(h)
    h = layer_norm(h, g2_ref, bn2_ref)
    h = jnp.dot(h.astype(w2_ref.dtype), w2_ref[...],
                preferred_element_type=jnp.float32) + b2_ref[...]

    # out = SiLU(x + net(x))
    o_ref[...] = silu(x + h).astype(o_ref.dtype)


def residual_block_forward(x, params, *, eps=1e-5, tile_b=128,
                           matmul_dtype=jnp.bfloat16):
    """Fused ResidualBlock forward.

    x:      (batch, dim) float array
    params: (ln1_gamma, ln1_beta, w1, b1, ln2_gamma, ln2_beta, w2, b2)
            with w stored as (in_features, out_features) [i.e. PyTorch W^T].
    """
    g1, bn1, w1, b1, g2, bn2, w2, b2 = params
    B, D = x.shape
    # The PyTorch module only works for input_dim == hidden_dim.
    assert w1.shape == (D, D) and w2.shape == (D, D)

    D_pad = _round_up(D, 128)                                # lane-dense features
    tile_b = _round_up(min(tile_b, _round_up(B, 8)), 8)      # sublane-aligned batch tile
    B_pad = _round_up(B, tile_b)
    nb = B_pad // tile_b

    # Zero-pad once at the wrapper level.
    x_p = jnp.zeros((B_pad, D_pad), x.dtype).at[:B, :D].set(x)

    def pad_vec(v):          # LN params & biases stay f32 (v5e has no bf16 VPU/EUP)
        return jnp.zeros((1, D_pad), jnp.float32).at[0, :D].set(v.astype(jnp.float32))

    def pad_mat(w):          # matmul operands in bf16 (f32 accumulation on the MXU)
        return jnp.zeros((D_pad, D_pad), matmul_dtype).at[:D, :D].set(w.astype(matmul_dtype))

    args = (x_p,
            pad_vec(g1), pad_vec(bn1), pad_mat(w1), pad_vec(b1),
            pad_vec(g2), pad_vec(bn2), pad_mat(w2), pad_vec(b2))

    row_spec = pl.BlockSpec((tile_b, D_pad), lambda i: (i, 0))   # pipelined over batch
    vec_spec = pl.BlockSpec((1, D_pad), lambda i: (0, 0))        # VMEM-resident
    mat_spec = pl.BlockSpec((D_pad, D_pad), lambda i: (0, 0))    # VMEM-resident
    in_specs = [row_spec,
                vec_spec, vec_spec, mat_spec, vec_spec,
                vec_spec, vec_spec, mat_spec, vec_spec]

    flops = 2 * 2 * B_pad * D_pad * D_pad                        # two dense matmuls
    transcendentals = 3 * B_pad * D_pad                          # SiLU exps (+rsqrt noise)
    bytes_accessed = int(sum(a.size * a.dtype.itemsize for a in args)
                         + B_pad * D_pad * x.dtype.itemsize)

    kernel = functools.partial(_residual_block_kernel, true_dim=D, eps=float(eps))

    out = pl.pallas_call(
        kernel,
        out_shape=jax.ShapeDtypeStruct((B_pad, D_pad), x.dtype),
        grid=(nb,),
        in_specs=in_specs,
        out_specs=row_spec,
        compiler_params=pltpu.CompilerParams(
            dimension_semantics=("parallel",),        # shard batch grid across TCs (v7x)
            vmem_limit_bytes=48 * 1024 * 1024,        # explicit, within v7x's 64 MiB
        ),
        cost_estimate=pl.CostEstimate(
            flops=flops,
            transcendentals=transcendentals,
            bytes_accessed=bytes_accessed,
        ),
    )(*args)

    return out[:B, :D]


def _reference_forward(x, params, *, eps=1e-5, matmul_dtype=jnp.bfloat16):
    """Pure-JAX reference mirroring the kernel's dtype policy."""
    g1, bn1, w1, b1, g2, bn2, w2, b2 = params
    x32 = x.astype(jnp.float32)

    def ln(h, g, b):
        mean = jnp.mean(h, axis=-1, keepdims=True)
        var = jnp.mean(jnp.square(h - mean), axis=-1, keepdims=True)
        return (h - mean) * jax.lax.rsqrt(var + jnp.float32(eps)) * g + b

    def silu(h):
        return h * (1.0 / (1.0 + jnp.exp(-h)))

    h = ln(x32, g1, bn1)
    h = jnp.dot(h.astype(matmul_dtype), w1.astype(matmul_dtype),
                preferred_element_type=jnp.float32) + b1
    h = silu(h)
    h = ln(h, g2, bn2)
    h = jnp.dot(h.astype(matmul_dtype), w2.astype(matmul_dtype),
                preferred_element_type=jnp.float32) + b2
    return silu(x32 + h).astype(x.dtype)


if __name__ == "__main__":
    batch, dim = 40, 96   # dim deliberately not a multiple of 128 -> exercises padding path

    key = jax.random.PRNGKey(0)
    ks = jax.random.split(key, 9)
    x = jax.random.normal(ks[0], (batch, dim), jnp.float32)

    bound = 1.0 / math.sqrt(dim)
    w1 = jax.random.uniform(ks[1], (dim, dim), jnp.float32, -bound, bound)
    b1 = jax.random.uniform(ks[2], (dim,), jnp.float32, -bound, bound)
    w2 = jax.random.uniform(ks[3], (dim, dim), jnp.float32, -bound, bound)
    b2 = jax.random.uniform(ks[4], (dim,), jnp.float32, -bound, bound)
    g1 = 1.0 + 0.1 * jax.random.normal(ks[5], (dim,), jnp.float32)
    bn1 = 0.1 * jax.random.normal(ks[6], (dim,), jnp.float32)
    g2 = 1.0 + 0.1 * jax.random.normal(ks[7], (dim,), jnp.float32)
    bn2 = 0.1 * jax.random.normal(ks[8], (dim,), jnp.float32)

    params = (g1, bn1, w1, b1, g2, bn2, w2, b2)

    out = residual_block_forward(x, params, tile_b=16)   # B_pad=48 -> grid of 3 batch tiles
    out = jax.block_until_ready(out)

    ref = _reference_forward(x, params)
    assert out.shape == (batch, dim)
    assert jnp.allclose(out, ref, atol=2e-3, rtol=2e-3), (
        float(jnp.max(jnp.abs(out - ref))))

    print("KERNEL_OK")
</pallas_src>

<mosaic_0001>
module attributes {stable_mosaic.version = 11 : i64} {
  func.func @_residual_block_kernel(%arg0: i32, %arg1: memref<16x128xf32, #tpu.memory_space<vmem>>, %arg2: memref<1x128xf32, #tpu.memory_space<vmem>>, %arg3: memref<1x128xf32, #tpu.memory_space<vmem>>, %arg4: memref<128x128xbf16, #tpu.memory_space<vmem>>, %arg5: memref<1x128xf32, #tpu.memory_space<vmem>>, %arg6: memref<1x128xf32, #tpu.memory_space<vmem>>, %arg7: memref<1x128xf32, #tpu.memory_space<vmem>>, %arg8: memref<128x128xbf16, #tpu.memory_space<vmem>>, %arg9: memref<1x128xf32, #tpu.memory_space<vmem>>, %arg10: memref<16x128xf32, #tpu.memory_space<vmem>>) attributes {dimension_semantics = [#tpu.dimension_semantics<parallel>], iteration_bounds = array<i64: 3>, scalar_prefetch = 0 : i64, scratch_operands = 0 : i64, tpu.core_type = #tpu.core_type<tc>, window_params = [{transform_indices = @transform_0, window_bounds = array<i64: 16, 128>}, {pipeline_mode = #tpu.pipeline_mode<synchronous>, transform_indices = @transform_1, window_bounds = array<i64: 1, 128>}, {pipeline_mode = #tpu.pipeline_mode<synchronous>, transform_indices = @transform_2, window_bounds = array<i64: 1, 128>}, {pipeline_mode = #tpu.pipeline_mode<synchronous>, transform_indices = @transform_3, window_bounds = array<i64: 128, 128>}, {pipeline_mode = #tpu.pipeline_mode<synchronous>, transform_indices = @transform_4, window_bounds = array<i64: 1, 128>}, {pipeline_mode = #tpu.pipeline_mode<synchronous>, transform_indices = @transform_5, window_bounds = array<i64: 1, 128>}, {pipeline_mode = #tpu.pipeline_mode<synchronous>, transform_indices = @transform_6, window_bounds = array<i64: 1, 128>}, {pipeline_mode = #tpu.pipeline_mode<synchronous>, transform_indices = @transform_7, window_bounds = array<i64: 128, 128>}, {pipeline_mode = #tpu.pipeline_mode<synchronous>, transform_indices = @transform_8, window_bounds = array<i64: 1, 128>}, {transform_indices = @transform_9, window_bounds = array<i64: 16, 128>}]} {
    %c0 = arith.constant 0 : index
    %c0_0 = arith.constant 0 : index
    %0 = vector.load %arg1[%c0, %c0_0] : memref<16x128xf32, #tpu.memory_space<vmem>>, vector<16x128xf32>
    %1 = tpu.iota {dimensions = array<i32: 1>} : vector<16x128xi32>
    %c96_i32 = arith.constant 96 : i32
    %2 = vector.broadcast %c96_i32 : i32 to vector<16x128xi32>
    %3 = arith.cmpi slt, %1, %2 : vector<16x128xi32>
    %cst = arith.constant 0.000000e+00 : f32
    %4 = vector.broadcast %cst : f32 to vector<16x128xf32>
    %5 = arith.select %3, %0, %4 : vector<16x128xi1>, vector<16x128xf32>
    %cst_1 = arith.constant dense<0.000000e+00> : vector<16xf32>
    %6 = vector.multi_reduction <add>, %5, %cst_1 [1] : vector<16x128xf32> to vector<16xf32>
    %7 = vector.shape_cast %6 : vector<16xf32> to vector<16x1xf32>
    %cst_2 = arith.constant 0.010416667 : f32
    %8 = vector.broadcast %cst_2 : f32 to vector<16x1xf32>
    %9 = arith.mulf %7, %8 : vector<16x1xf32>
    %10 = vector.broadcast %9 : vector<16x1xf32> to vector<16x128xf32>
    %11 = arith.subf %0, %10 : vector<16x128xf32>
    %cst_3 = arith.constant 0.000000e+00 : f32
    %12 = vector.broadcast %cst_3 : f32 to vector<16x128xf32>
    %13 = arith.select %3, %11, %12 : vector<16x128xi1>, vector<16x128xf32>
    %14 = arith.mulf %13, %13 : vector<16x128xf32>
    %cst_4 = arith.constant dense<0.000000e+00> : vector<16xf32>
    %15 = vector.multi_reduction <add>, %14, %cst_4 [1] : vector<16x128xf32> to vector<16xf32>
    %16 = vector.shape_cast %15 : vector<16xf32> to vector<16x1xf32>
    %cst_5 = arith.constant 0.010416667 : f32
    %17 = vector.broadcast %cst_5 : f32 to vector<16x1xf32>
    %18 = arith.mulf %16, %17 : vector<16x1xf32>
    %cst_6 = arith.constant 9.99999974E-6 : f32
    %19 = vector.broadcast %cst_6 : f32 to vector<16x1xf32>
    %20 = arith.addf %18, %19 : vector<16x1xf32>
    %21 = math.rsqrt %20 : vector<16x1xf32>
    %22 = vector.broadcast %21 : vector<16x1xf32> to vector<16x128xf32>
    %23 = arith.mulf %13, %22 : vector<16x128xf32>
    %c0_7 = arith.constant 0 : index
    %c0_8 = arith.constant 0 : index
    %24 = vector.load %arg2[%c0_7, %c0_8] : memref<1x128xf32, #tpu.memory_space<vmem>>, vector<1x128xf32>
    %25 = vector.broadcast %24 : vector<1x128xf32> to vector<16x128xf32>
    %26 = arith.mulf %23, %25 : vector<16x128xf32>
    %c0_9 = arith.constant 0 : index
    %c0_10 = arith.constant 0 : index
    %27 = vector.load %arg3[%c0_9, %c0_10] : memref<1x128xf32, #tpu.memory_space<vmem>>, vector<1x128xf32>
    %28 = vector.broadcast %27 : vector<1x128xf32> to vector<16x128xf32>
    %29 = arith.addf %26, %28 : vector<16x128xf32>
    %30 = arith.truncf %29 : vector<16x128xf32> to vector<16x128xbf16>
    %c0_11 = arith.constant 0 : index
    %c0_12 = arith.constant 0 : index
    %31 = vector.load %arg4[%c0_11, %c0_12] : memref<128x128xbf16, #tpu.memory_space<vmem>>, vector<128x128xbf16>
    %cst_13 = arith.constant dense<0.000000e+00> : vector<16x128xf32>
    %32 = tpu.matmul %30, %31, %cst_13 {dimension_numbers = #tpu.dot_dimension_numbers<[1], [0], [0], [1], [0, 0, 1, 1], [], []>} : vector<16x128xbf16>, vector<128x128xbf16>, vector<16x128xf32> -> vector<16x128xf32>
    %c0_14 = arith.constant 0 : index
    %c0_15 = arith.constant 0 : index
    %33 = vector.load %arg5[%c0_14, %c0_15] : memref<1x128xf32, #tpu.memory_space<vmem>>, vector<1x128xf32>
    %34 = vector.broadcast %33 : vector<1x128xf32> to vector<16x128xf32>
    %35 = arith.addf %32, %34 : vector<16x128xf32>
    %cst_16 = arith.constant 0.000000e+00 : f32
    %36 = vector.broadcast %cst_16 : f32 to vector<16x128xf32>
    %37 = arith.subf %36, %35 : vector<16x128xf32>
    %38 = math.exp %37 : vector<16x128xf32>
    %cst_17 = arith.constant 1.000000e+00 : f32
    %39 = vector.broadcast %cst_17 : f32 to vector<16x128xf32>
    %40 = arith.addf %39, %38 : vector<16x128xf32>
    %cst_18 = arith.constant 1.000000e+00 : f32
    %41 = vector.broadcast %cst_18 : f32 to vector<16x128xf32>
    %42 = arith.divf %41, %40 : vector<16x128xf32>
    %43 = arith.mulf %35, %42 : vector<16x128xf32>
    %cst_19 = arith.constant 0.000000e+00 : f32
    %44 = vector.broadcast %cst_19 : f32 to vector<16x128xf32>
    %45 = arith.select %3, %43, %44 : vector<16x128xi1>, vector<16x128xf32>
    %cst_20 = arith.constant dense<0.000000e+00> : vector<16xf32>
    %46 = vector.multi_reduction <add>, %45, %cst_20 [1] : vector<16x128xf32> to vector<16xf32>
    %47 = vector.shape_cast %46 : vector<16xf32> to vector<16x1xf32>
    %cst_21 = arith.constant 0.010416667 : f32
    %48 = vector.broadcast %cst_21 : f32 to vector<16x1xf32>
    %49 = arith.mulf %47, %48 : vector<16x1xf32>
    %50 = vector.broadcast %49 : vector<16x1xf32> to vector<16x128xf32>
    %51 = arith.subf %43, %50 : vector<16x128xf32>
    %cst_22 = arith.constant 0.000000e+00 : f32
    %52 = vector.broadcast %cst_22 : f32 to vector<16x128xf32>
    %53 = arith.select %3, %51, %52 : vector<16x128xi1>, vector<16x128xf32>
    %54 = arith.mulf %53, %53 : vector<16x128xf32>
    %cst_23 = arith.constant dense<0.000000e+00> : vector<16xf32>
    %55 = vector.multi_reduction <add>, %54, %cst_23 [1] : vector<16x128xf32> to vector<16xf32>
    %56 = vector.shape_cast %55 : vector<16xf32> to vector<16x1xf32>
    %cst_24 = arith.constant 0.010416667 : f32
    %57 = vector.broadcast %cst_24 : f32 to vector<16x1xf32>
    %58 = arith.mulf %56, %57 : vector<16x1xf32>
    %cst_25 = arith.constant 9.99999974E-6 : f32
    %59 = vector.broadcast %cst_25 : f32 to vector<16x1xf32>
    %60 = arith.addf %58, %59 : vector<16x1xf32>
    %61 = math.rsqrt %60 : vector<16x1xf32>
    %62 = vector.broadcast %61 : vector<16x1xf32> to vector<16x128xf32>
    %63 = arith.mulf %53, %62 : vector<16x128xf32>
    %c0_26 = arith.constant 0 : index
    %c0_27 = arith.constant 0 : index
    %64 = vector.load %arg6[%c0_26, %c0_27] : memref<1x128xf32, #tpu.memory_space<vmem>>, vector<1x128xf32>
    %65 = vector.broadcast %64 : vector<1x128xf32> to vector<16x128xf32>
    %66 = arith.mulf %63, %65 : vector<16x128xf32>
    %c0_28 = arith.constant 0 : index
    %c0_29 = arith.constant 0 : index
    %67 = vector.load %arg7[%c0_28, %c0_29] : memref<1x128xf32, #tpu.memory_space<vmem>>, vector<1x128xf32>
    %68 = vector.broadcast %67 : vector<1x128xf32> to vector<16x128xf32>
    %69 = arith.addf %66, %68 : vector<16x128xf32>
    %70 = arith.truncf %69 : vector<16x128xf32> to vector<16x128xbf16>
    %c0_30 = arith.constant 0 : index
    %c0_31 = arith.constant 0 : index
    %71 = vector.load %arg8[%c0_30, %c0_31] : memref<128x128xbf16, #tpu.memory_space<vmem>>, vector<128x128xbf16>
    %cst_32 = arith.constant dense<0.000000e+00> : vector<16x128xf32>
    %72 = tpu.matmul %70, %71, %cst_32 {dimension_numbers = #tpu.dot_dimension_numbers<[1], [0], [0], [1], [0, 0, 1, 1], [], []>} : vector<16x128xbf16>, vector<128x128xbf16>, vector<16x128xf32> -> vector<16x128xf32>
    %c0_33 = arith.constant 0 : index
    %c0_34 = arith.constant 0 : index
    %73 = vector.load %arg9[%c0_33, %c0_34] : memref<1x128xf32, #tpu.memory_space<vmem>>, vector<1x128xf32>
    %74 = vector.broadcast %73 : vector<1x128xf32> to vector<16x128xf32>
    %75 = arith.addf %72, %74 : vector<16x128xf32>
    %76 = arith.addf %0, %75 : vector<16x128xf32>
    %cst_35 = arith.constant 0.000000e+00 : f32
    %77 = vector.broadcast %cst_35 : f32 to vector<16x128xf32>
    %78 = arith.subf %77, %76 : vector<16x128xf32>
    %79 = math.exp %78 : vector<16x128xf32>
    %cst_36 = arith.constant 1.000000e+00 : f32
    %80 = vector.broadcast %cst_36 : f32 to vector<16x128xf32>
    %81 = arith.addf %80, %79 : vector<16x128xf32>
    %cst_37 = arith.constant 1.000000e+00 : f32
    %82 = vector.broadcast %cst_37 : f32 to vector<16x128xf32>
    %83 = arith.divf %82, %81 : vector<16x128xf32>
    %84 = arith.mulf %76, %83 : vector<16x128xf32>
    %c0_38 = arith.constant 0 : index
    %c0_39 = arith.constant 0 : index
    %85 = vector.load %arg10[%c0_38, %c0_39] : memref<16x128xf32, #tpu.memory_space<vmem>>, vector<16x128xf32>
    tpu.vector_store %arg10[%c0_38, %c0_39], %84 {strides = array<i32>} : memref<16x128xf32, #tpu.memory_space<vmem>>, vector<16x128xf32>,
    return
  }
  func.func @transform_0(%arg0: i32) -> (i32, i32) {
    %c0_i32 = arith.constant 0 : i32
    %c0_i32_0 = arith.constant 0 : i32
    return %arg0, %c0_i32 : i32, i32
  }
  func.func @transform_1(%arg0: i32) -> (i32, i32) {
    %c0_i32 = arith.constant 0 : i32
    %c0_i32_0 = arith.constant 0 : i32
    %c0_i32_1 = arith.constant 0 : i32
    return %c0_i32, %c0_i32_0 : i32, i32
  }
  func.func @transform_2(%arg0: i32) -> (i32, i32) {
    %c0_i32 = arith.constant 0 : i32
    %c0_i32_0 = arith.constant 0 : i32
    %c0_i32_1 = arith.constant 0 : i32
    return %c0_i32, %c0_i32_0 : i32, i32
  }
  func.func @transform_3(%arg0: i32) -> (i32, i32) {
    %c0_i32 = arith.constant 0 : i32
    %c0_i32_0 = arith.constant 0 : i32
    %c0_i32_1 = arith.constant 0 : i32
    return %c0_i32, %c0_i32_0 : i32, i32
  }
  func.func @transform_4(%arg0: i32) -> (i32, i32) {
    %c0_i32 = arith.constant 0 : i32
    %c0_i32_0 = arith.constant 0 : i32
    %c0_i32_1 = arith.constant 0 : i32
    return %c0_i32, %c0_i32_0 : i32, i32
  }
  func.func @transform_5(%arg0: i32) -> (i32, i32) {
    %c0_i32 = arith.constant 0 : i32
    %c0_i32_0 = arith.constant 0 : i32
    %c0_i32_1 = arith.constant 0 : i32
    return %c0_i32, %c0_i32_0 : i32, i32
  }
  func.func @transform_6(%arg0: i32) -> (i32, i32) {
    %c0_i32 = arith.constant 0 : i32
    %c0_i32_0 = arith.constant 0 : i32
    %c0_i32_1 = arith.constant 0 : i32
    return %c0_i32, %c0_i32_0 : i32, i32
  }
  func.func @transform_7(%arg0: i32) -> (i32, i32) {
    %c0_i32 = arith.constant 0 : i32
    %c0_i32_0 = arith.constant 0 : i32
    %c0_i32_1 = arith.constant 0 : i32
    return %c0_i32, %c0_i32_0 : i32, i32
  }
  func.func @transform_8(%arg0: i32) -> (i32, i32) {
    %c0_i32 = arith.constant 0 : i32
    %c0_i32_0 = arith.constant 0 : i32
    %c0_i32_1 = arith.constant 0 : i32
    return %c0_i32, %c0_i32_0 : i32, i32
  }
  func.func @transform_9(%arg0: i32) -> (i32, i32) {
    %c0_i32 = arith.constant 0 : i32
    %c0_i32_0 = arith.constant 0 : i32
    return %arg0, %c0_i32 : i32, i32
  }
}

</mosaic_0001>

<llo_original>
// kernel: tpu_custom_call.1
$region0: #{tpu_custom_call.1}
  #allocation0 [shape = 'u32[]', space=smem, size = 0x4, offset = 0x4, fixed_abs, tag = 'smem constant byte address 0x4 - core index']
  #allocation1 [shape = 'u32[72,128]{1,0:T(1,128)}', space=vmem, size = 0x9000, scoped, tag = 'internal scratch']
  %s0 = inlined_call_operand.hbm [shape: f32[48,128], index: 0, kind: input, shape index: {}]
  %s1 = inlined_call_operand.hbm [shape: f32[1,128], index: 1, kind: input, shape index: {}]
  %s2 = inlined_call_operand.vmem [shape: f32[1,128], index: 2, kind: input, shape index: {}]
  %s3 = inlined_call_operand.hbm [shape: bf16[128,128], index: 3, kind: input, shape index: {}]
  %s4 = inlined_call_operand.vmem [shape: f32[1,128], index: 4, kind: input, shape index: {}]
  %s5 = inlined_call_operand.vmem [shape: f32[1,128], index: 5, kind: input, shape index: {}]
  %s6 = inlined_call_operand.vmem [shape: f32[1,128], index: 6, kind: input, shape index: {}]
  %s7 = inlined_call_operand.hbm [shape: bf16[128,128], index: 7, kind: input, shape index: {}]
  %s8 = inlined_call_operand.vmem [shape: f32[1,128], index: 8, kind: input, shape index: {}]
  %s9 = inlined_call_operand.hbm [shape: f32[48,128], index: 9, kind: output, shape index: {}]
  %s10 = sld [smem:[#allocation0]]
  $region85: #{tpu_custom_call.1} parent=0
    _
  %s12 = ssub.s32 1, %s10
  %s13 = scalar_select 0, %s12, %s10
  $region1: #{tpu_custom_call.1} parent=0
    #allocation2 [shape = 'u8[16384]{0}', space=vmem, size = 0x4000, scoped, tag = 'input window, operand 0']
    #allocation3 [shape = 's32[2]{0}', space=sflag, size = 0x8, scoped, tag = 'scoped memory for tpu_custom_call.1']
    #allocation4 [shape = 's32[2]{0}', space=sflag, size = 0x8, scoped, tag = 'scoped memory for tpu_custom_call.1']
    #allocation5 [shape = 'u8[512]{0}', space=vmem, size = 0x400, scoped, tag = 'input window, operand 1, single buffered']
    #allocation6 [shape = 's32[1]{0}', space=sflag, size = 0x4, scoped, tag = 'scoped memory for tpu_custom_call.1']
    #allocation7 [shape = 'u8[32768]{0}', space=vmem, size = 0x8000, scoped, tag = 'input window, operand 3, single buffered']
    #allocation8 [shape = 'u8[32768]{0}', space=vmem, size = 0x8000, scoped, tag = 'input window, operand 7, single buffered']
    #allocation9 [shape = 's32[1]{0}', space=sflag, size = 0x4, scoped, tag = 'scoped memory for tpu_custom_call.1']
    #allocation10 [shape = 'u8[16384]{0}', space=vmem, size = 0x4000, scoped, tag = 'output window, operand 0']
    %14 = vsyncpa [#allocation3], 0
    %s15 = scalar_lea.sflag [#allocation3], 1
    %16 = vsyncpa %s15, 0
    %17 = vsyncpa [#allocation6], 0
    %18 = vsyncpa [#allocation9], 0
    %19 = vsyncpa [#allocation4], 0
    %s20 = scalar_lea.sflag [#allocation4], 1
    %21 = vsyncpa %s20, 0
    loop: start=0, step=1, limit=5
    $region2: #{tpu_custom_call.1} parent=1 // loop_pre_header
      _
    $region3: #{tpu_custom_call.1} parent=1 // loop_header
      %s23 = sphi 0, %s27
      %p24 = scmp.ge.s32.totalorder %s23, 5
      %s33 = sphi 0, %s35
      %s36 = sphi 0, %s33
      %s37 = sphi 0, %s36
      %s53 = sphi 0, %s37
      %s57 = sphi 0, %s57
      %s59 = sphi 0, %s57
      %s60 = sphi 0, %s59
      %s74 = sphi 0, %s60
      %s78 = sphi 0, %s78
      %s80 = sphi 0, %s78
      %s81 = sphi 0, %s80
      %s95 = sphi 0, %s81
      %s99 = sphi 0, %s99
      %s101 = sphi 0, %s99
      %s102 = sphi 0, %s101
      %s116 = sphi 0, %s102
      %s120 = sphi 0, %s120
      %s122 = sphi 0, %s120
      %s123 = sphi 0, %s122
      %s137 = sphi 0, %s123
      %s141 = sphi 0, %s141
      %s143 = sphi 0, %s141
      %s144 = sphi 0, %s143
      %s158 = sphi 0, %s144
      %s162 = sphi 0, %s162
      %s164 = sphi 0, %s162
      %s165 = sphi 0, %s164
      %s179 = sphi 0, %s165
      %s183 = sphi 0, %s183
      %s185 = sphi 0, %s183
      %s186 = sphi 0, %s185
      %s200 = sphi 0, %s186
      %s204 = sphi 0, %s204
      %s206 = sphi 0, %s204
      %s207 = sphi 0, %s206
      %s221 = sphi 0, %s207
      %s227 = sphi 0, %s229
      %s230 = sphi 0, %s227
      %s231 = sphi 0, %s230
      %s247 = sphi 0, %s231
    $region4: #{tpu_custom_call.1} parent=1 // loop_header_branch
      %26 = sbr.rel (%p24) target = $region8
    $region5: #{tpu_custom_call.1} parent=1 // loop_body
      %s28 = ssub.s32 %s23, 1
      %s29 = ssub.s32 %s23, 2
      %s30 = sadd.s32 %s23, 1
      %s31 = ssub.s32 %s23, %s30
      %p32 = scmp.eq.s32.totalorder %s31, 0
      %s34 = sadd.s32 %s33, 1
      %s35 = scalar_select %p32, %s33, %s34
      %p38 = pneg %p32
      %p39 = scmp.eq.s32.totalorder %s23, 2
      %p40 = por %p38, %p39
      %p41 = scmp.ne.s32.totalorder %s33, %s36
      %p42 = scmp.eq.s32.totalorder %s23, 0
      %p43 = por %p41, %p42
      %p44 = scmp.ne.s32.totalorder %s33, %s36
      %p45 = scmp.eq.s32.totalorder %s28, 2
      %p46 = por %p44, %p45
      %p47 = scmp.ne.s32.totalorder %s36, %s37
      %p48 = scmp.eq.s32.totalorder %s28, 0
      %p49 = por %p47, %p48
      %p50 = scmp.ne.s32.totalorder %s36, %s37
      %p51 = scmp.eq.s32.totalorder %s29, 2
      %p52 = por %p50, %p51
      %p54 = scmp.ne.s32.totalorder %s37, %s53
      %p55 = scmp.eq.s32.totalorder %s29, 0
      %p56 = por %p54, %p55
      %s58 = sadd.s32 %s57, 1
      %p61 = scmp.eq.s32.totalorder %s23, 2
      %p62 = scmp.ne.s32.totalorder %s57, %s59
      %p63 = scmp.eq.s32.totalorder %s23, 0
      %p64 = por %p62, %p63
      %p65 = scmp.ne.s32.totalorder %s57, %s59
      %p66 = scmp.eq.s32.totalorder %s28, 2
      %p67 = por %p65, %p66
      %p68 = scmp.ne.s32.totalorder %s59, %s60
      %p69 = scmp.eq.s32.totalorder %s28, 0
      %p70 = por %p68, %p69
      %p71 = scmp.ne.s32.totalorder %s59, %s60
      %p72 = scmp.eq.s32.totalorder %s29, 2
      %p73 = por %p71, %p72
      %p75 = scmp.ne.s32.totalorder %s60, %s74
      %p76 = scmp.eq.s32.totalorder %s29, 0
      %p77 = por %p75, %p76
      %s79 = sadd.s32 %s78, 1
      %p82 = scmp.eq.s32.totalorder %s23, 2
      %p83 = scmp.ne.s32.totalorder %s78, %s80
      %p84 = scmp.eq.s32.totalorder %s23, 0
      %p85 = por %p83, %p84
      %p86 = scmp.ne.s32.totalorder %s78, %s80
      %p87 = scmp.eq.s32.totalorder %s28, 2
      %p88 = por %p86, %p87
      %p89 = scmp.ne.s32.totalorder %s80, %s81
      %p90 = scmp.eq.s32.totalorder %s28, 0
      %p91 = por %p89, %p90
      %p92 = scmp.ne.s32.totalorder %s80, %s81
      %p93 = scmp.eq.s32.totalorder %s29, 2
      %p94 = por %p92, %p93
      %p96 = scmp.ne.s32.totalorder %s81, %s95
      %p97 = scmp.eq.s32.totalorder %s29, 0
      %p98 = por %p96, %p97
      %s100 = sadd.s32 %s99, 1
      %p103 = scmp.eq.s32.totalorder %s23, 2
      %p104 = scmp.ne.s32.totalorder %s99, %s101
      %p105 = scmp.eq.s32.totalorder %s23, 0
      %p106 = por %p104, %p105
      %p107 = scmp.ne.s32.totalorder %s99, %s101
      %p108 = scmp.eq.s32.totalorder %s28, 2
      %p109 = por %p107, %p108
      %p110 = scmp.ne.s32.totalorder %s101, %s102
      %p111 = scmp.eq.s32.totalorder %s28, 0
      %p112 = por %p110, %p111
      %p113 = scmp.ne.s32.totalorder %s101, %s102
      %p114 = scmp.eq.s32.totalorder %s29, 2
      %p115 = por %p113, %p114
      %p117 = scmp.ne.s32.totalorder %s102, %s116
      %p118 = scmp.eq.s32.totalorder %s29, 0
      %p119 = por %p117, %p118
      %s121 = sadd.s32 %s120, 1
      %p124 = scmp.eq.s32.totalorder %s23, 2
      %p125 = scmp.ne.s32.totalorder %s120, %s122
      %p126 = scmp.eq.s32.totalorder %s23, 0
      %p127 = por %p125, %p126
      %p128 = scmp.ne.s32.totalorder %s120, %s122
      %p129 = scmp.eq.s32.totalorder %s28, 2
      %p130 = por %p128, %p129
      %p131 = scmp.ne.s32.totalorder %s122, %s123
      %p132 = scmp.eq.s32.totalorder %s28, 0
      %p133 = por %p131, %p132
      %p134 = scmp.ne.s32.totalorder %s122, %s123
      %p135 = scmp.eq.s32.totalorder %s29, 2
      %p136 = por %p134, %p135
      %p138 = scmp.ne.s32.totalorder %s123, %s137
      %p139 = scmp.eq.s32.totalorder %s29, 0
      %p140 = por %p138, %p139
      %s142 = sadd.s32 %s141, 1
      %p145 = scmp.eq.s32.totalorder %s23, 2
      %p146 = scmp.ne.s32.totalorder %s141, %s143
      %p147 = scmp.eq.s32.totalorder %s23, 0
      %p148 = por %p146, %p147
      %p149 = scmp.ne.s32.totalorder %s141, %s143
      %p150 = scmp.eq.s32.totalorder %s28, 2
      %p151 = por %p149, %p150
      %p152 = scmp.ne.s32.totalorder %s143, %s144
      %p153 = scmp.eq.s32.totalorder %s28, 0
      %p154 = por %p152, %p153
      %p155 = scmp.ne.s32.totalorder %s143, %s144
      %p156 = scmp.eq.s32.totalorder %s29, 2
      %p157 = por %p155, %p156
      %p159 = scmp.ne.s32.totalorder %s144, %s158
      %p160 = scmp.eq.s32.totalorder %s29, 0
      %p161 = por %p159, %p160
      %s163 = sadd.s32 %s162, 1
      %p166 = scmp.eq.s32.totalorder %s23, 2
      %p167 = scmp.ne.s32.totalorder %s162, %s164
      %p168 = scmp.eq.s32.totalorder %s23, 0
      %p169 = por %p167, %p168
      %p170 = scmp.ne.s32.totalorder %s162, %s164
      %p171 = scmp.eq.s32.totalorder %s28, 2
      %p172 = por %p170, %p171
      %p173 = scmp.ne.s32.totalorder %s164, %s165
      %p174 = scmp.eq.s32.totalorder %s28, 0
      %p175 = por %p173, %p174
      %p176 = scmp.ne.s32.totalorder %s164, %s165
      %p177 = scmp.eq.s32.totalorder %s29, 2
      %p178 = por %p176, %p177
      %p180 = scmp.ne.s32.totalorder %s165, %s179
      %p181 = scmp.eq.s32.totalorder %s29, 0
      %p182 = por %p180, %p181
      %s184 = sadd.s32 %s183, 1
      %p187 = scmp.eq.s32.totalorder %s23, 2
      %p188 = scmp.ne.s32.totalorder %s183, %s185
      %p189 = scmp.eq.s32.totalorder %s23, 0
      %p190 = por %p188, %p189
      %p191 = scmp.ne.s32.totalorder %s183, %s185
      %p192 = scmp.eq.s32.totalorder %s28, 2
      %p193 = por %p191, %p192
      %p194 = scmp.ne.s32.totalorder %s185, %s186
      %p195 = scmp.eq.s32.totalorder %s28, 0
      %p196 = por %p194, %p195
      %p197 = scmp.ne.s32.totalorder %s185, %s186
      %p198 = scmp.eq.s32.totalorder %s29, 2
      %p199 = por %p197, %p198
      %p201 = scmp.ne.s32.totalorder %s186, %s200
      %p202 = scmp.eq.s32.totalorder %s29, 0
      %p203 = por %p201, %p202
      %s205 = sadd.s32 %s204, 1
      %p208 = scmp.eq.s32.totalorder %s23, 2
      %p209 = scmp.ne.s32.totalorder %s204, %s206
      %p210 = scmp.eq.s32.totalorder %s23, 0
      %p211 = por %p209, %p210
      %p212 = scmp.ne.s32.totalorder %s204, %s206
      %p213 = scmp.eq.s32.totalorder %s28, 2
      %p214 = por %p212, %p213
      %p215 = scmp.ne.s32.totalorder %s206, %s207
      %p216 = scmp.eq.s32.totalorder %s28, 0
      %p217 = por %p215, %p216
      %p218 = scmp.ne.s32.totalorder %s206, %s207
      %p219 = scmp.eq.s32.totalorder %s29, 2
      %p220 = por %p218, %p219
      %p222 = scmp.ne.s32.totalorder %s207, %s221
      %p223 = scmp.eq.s32.totalorder %s29, 0
      %p224 = por %p222, %p223
      %s225 = ssub.s32 %s23, %s30
      %p226 = scmp.eq.s32.totalorder %s225, 0
      %s228 = sadd.s32 %s227, 1
      %s229 = scalar_select %p226, %s227, %s228
      %p232 = pneg %p226
      %p233 = scmp.eq.s32.totalorder %s23, 2
      %p234 = por %p232, %p233
      %p235 = scmp.ne.s32.totalorder %s227, %s230
      %p236 = scmp.eq.s32.totalorder %s23, 0
      %p237 = por %p235, %p236
      %p238 = scmp.ne.s32.totalorder %s227, %s230
      %p239 = scmp.eq.s32.totalorder %s28, 2
      %p240 = por %p238, %p239
      %p241 = scmp.ne.s32.totalorder %s230, %s231
      %p242 = scmp.eq.s32.totalorder %s28, 0
      %p243 = por %p241, %p242
      %p244 = scmp.ne.s32.totalorder %s230, %s231
      %p245 = scmp.eq.s32.totalorder %s29, 2
      %p246 = por %p244, %p245
      %p248 = scmp.ne.s32.totalorder %s231, %s247
      %p249 = scmp.eq.s32.totalorder %s29, 0
      %p250 = por %p248, %p249
      %p251 = scmp.le.s32.totalorder 1, %s23
      %p252 = scmp.lt.s32.totalorder %s23, 4
      %p253 = pnand %p251, %p252
      %p254 = pneg %p253
      // Predicated region
      $region9: #{tpu_custom_call.1} parent=5 // pred_check
        _
      $region10: #{tpu_custom_call.1} parent=5 // pred_check_branch
        %256 = sbr.rel (%p253) target = $region12
      $region11: #{tpu_custom_call.1} parent=5 // pred_region
        %s257 = ssub.s32 %s23, 1
        // Predicated region
        $region13: #{tpu_custom_call.1} parent=11 // pred_check
          %p258 = pneg %p70
        $region14: #{tpu_custom_call.1} parent=11 // pred_check_branch
          %260 = sbr.rel (%p258) target = $region16
        $region15: #{tpu_custom_call.1} parent=11 // pred_region
          %262 = vsyncadd [#allocation6], 0
          %s264 = sshll.u32 %s1, 4
          %s265 = int_to_ptr.hbm [resolvable:$true] %s264
          %s266 = sshll.u32 [#allocation5], 4
          %s267 = int_to_ptr.vmem [resolvable:$true] %s266
          %269 = dma.hbm_to_vmem [thread:$0]  %s265, 16, %s267, [#allocation6]
        $region16: #{tpu_custom_call.1} parent=11 // pred_fallthru
          _
        // Predicated region
        $region17: #{tpu_custom_call.1} parent=11 // pred_check
          %p270 = pneg %p91
        $region18: #{tpu_custom_call.1} parent=11 // pred_check_branch
          %272 = sbr.rel (%p270) target = $region20
        $region19: #{tpu_custom_call.1} parent=11 // pred_region
          _
        $region20: #{tpu_custom_call.1} parent=11 // pred_fallthru
          _
        // Predicated region
        $region21: #{tpu_custom_call.1} parent=11 // pred_check
          %p273 = pneg %p112
        $region22: #{tpu_custom_call.1} parent=11 // pred_check_branch
          %275 = sbr.rel (%p273) target = $region24
        $region23: #{tpu_custom_call.1} parent=11 // pred_region
          %277 = vsyncadd [#allocation6], 0
          %s278 = sshll.u32 %s3, 4
          %s279 = int_to_ptr.hbm [resolvable:$true] %s278
          %s280 = sshll.u32 [#allocation7], 4
          %s281 = int_to_ptr.vmem [resolvable:$true] %s280
          %286 = dma.hbm_to_vmem [thread:$0]  %s279, 1024, %s281, [#allocation6], 64, 64, 4
        $region24: #{tpu_custom_call.1} parent=11 // pred_fallthru
          _
        // Predicated region
        $region25: #{tpu_custom_call.1} parent=11 // pred_check
          %p287 = pneg %p133
        $region26: #{tpu_custom_call.1} parent=11 // pred_check_branch
          %289 = sbr.rel (%p287) target = $region28
        $region27: #{tpu_custom_call.1} parent=11 // pred_region
          _
        $region28: #{tpu_custom_call.1} parent=11 // pred_fallthru
          _
        // Predicated region
        $region29: #{tpu_custom_call.1} parent=11 // pred_check
          %p290 = pneg %p154
        $region30: #{tpu_custom_call.1} parent=11 // pred_check_branch
          %292 = sbr.rel (%p290) target = $region32
        $region31: #{tpu_custom_call.1} parent=11 // pred_region
          _
        $region32: #{tpu_custom_call.1} parent=11 // pred_fallthru
          _
        // Predicated region
        $region33: #{tpu_custom_call.1} parent=11 // pred_check
          %p293 = pneg %p175
        $region34: #{tpu_custom_call.1} parent=11 // pred_check_branch
          %295 = sbr.rel (%p293) target = $region36
        $region35: #{tpu_custom_call.1} parent=11 // pred_region
          _
        $region36: #{tpu_custom_call.1} parent=11 // pred_fallthru
          _
        // Predicated region
        $region37: #{tpu_custom_call.1} parent=11 // pred_check
          %p296 = pneg %p196
        $region38: #{tpu_custom_call.1} parent=11 // pred_check_branch
          %298 = sbr.rel (%p296) target = $region40
        $region39: #{tpu_custom_call.1} parent=11 // pred_region
          %300 = vsyncadd [#allocation9], 0
          %s301 = sshll.u32 %s7, 4
          %s302 = int_to_ptr.hbm [resolvable:$true] %s301
          %s303 = sshll.u32 [#allocation8], 4
          %s304 = int_to_ptr.vmem [resolvable:$true] %s303
          %309 = dma.hbm_to_vmem [thread:$0]  %s302, 1024, %s304, [#allocation9], 64, 64, 4
        $region40: #{tpu_custom_call.1} parent=11 // pred_fallthru
          _
        // Predicated region
        $region41: #{tpu_custom_call.1} parent=11 // pred_check
          %p310 = pneg %p217
        $region42: #{tpu_custom_call.1} parent=11 // pred_check_branch
          %312 = sbr.rel (%p310) target = $region44
        $region43: #{tpu_custom_call.1} parent=11 // pred_region
          _
        $region44: #{tpu_custom_call.1} parent=11 // pred_fallthru
          _
      $region12: #{tpu_custom_call.1} parent=5 // pred_fallthru
        _
      %p313 = scmp.lt.s32.totalorder %s23, 3
      // Predicated region
      $region45: #{tpu_custom_call.1} parent=5 // pred_check
        %p314 = pneg %p313
      $region46: #{tpu_custom_call.1} parent=5 // pred_check_branch
        %316 = sbr.rel (%p314) target = $region48
      $region47: #{tpu_custom_call.1} parent=5 // pred_region
        // Predicated region
        $region49: #{tpu_custom_call.1} parent=47 // pred_check
          %p317 = pneg %p43
        $region50: #{tpu_custom_call.1} parent=47 // pred_check_branch
          %319 = sbr.rel (%p317) target = $region52
        $region51: #{tpu_custom_call.1} parent=47 // pred_region
          %s320 = sand.u32 %s33, 1
          %s321 = scalar_lea.sflag [#allocation3], %s320
          %s322 = sand.u32 %s33, 1
          %s323 = smul.addr %s322, 16
          %s324 = scalar_lea.vmem [#allocation2], %s323
          %s325 = smul.u32 2, %s23
          %327 = vsyncadd %s321, 0
          %s328 = smul.addr %s325, 8
          %s329 = scalar_lea.hbm %s0, %s328
          %s330 = sshll.u32 %s329, 4
          %s331 = int_to_ptr.hbm [resolvable:$true] %s330
          %s332 = sshll.u32 %s324, 4
          %s333 = int_to_ptr.vmem [resolvable:$true] %s332
          %338 = dma.hbm_to_vmem [thread:$0]  %s331, 256, %s333, %s321, 128, 128, 8
        $region52: #{tpu_custom_call.1} parent=47 // pred_fallthru
          _
      $region48: #{tpu_custom_call.1} parent=5 // pred_fallthru
        _
      %p339 = scmp.le.s32.totalorder 1, %s23
      %p340 = scmp.lt.s32.totalorder %s23, 4
      %p341 = pnand %p339, %p340
      %p342 = pneg %p341
      // Predicated region
      $region53: #{tpu_custom_call.1} parent=5 // pred_check
        _
      $region54: #{tpu_custom_call.1} parent=5 // pred_check_branch
        %344 = sbr.rel (%p341) target = $region56
      $region55: #{tpu_custom_call.1} parent=5 // pred_region
        %s345 = ssub.s32 %s23, 1
        %s346 = sand.u32 %s36, 1
        %s347 = scalar_lea.sflag [#allocation3], %s346
        %s348 = sand.u32 %s36, 1
        %s349 = smul.addr %s348, 16
        %s350 = scalar_lea.vmem [#allocation2], %s349
        // Predicated region
        $region57: #{tpu_custom_call.1} parent=55 // pred_check
          %p351 = pneg %p49
        $region58: #{tpu_custom_call.1} parent=55 // pred_check_branch
          %353 = sbr.rel (%p351) target = $region60
        $region59: #{tpu_custom_call.1} parent=55 // pred_region
          %355 = dma.done %s347, 256
        $region60: #{tpu_custom_call.1} parent=55 // pred_fallthru
          _
        // Predicated region
        $region61: #{tpu_custom_call.1} parent=55 // pred_check
          %p356 = pneg %p70
        $region62: #{tpu_custom_call.1} parent=55 // pred_check_branch
          %358 = sbr.rel (%p356) target = $region64
        $region63: #{tpu_custom_call.1} parent=55 // pred_region
          %360 = dma.done [#allocation6], 16
        $region64: #{tpu_custom_call.1} parent=55 // pred_fallthru
          _
        // Predicated region
        $region65: #{tpu_custom_call.1} parent=55 // pred_check
          %p361 = pneg %p112
        $region66: #{tpu_custom_call.1} parent=55 // pred_check_branch
          %363 = sbr.rel (%p361) target = $region68
        $region67: #{tpu_custom_call.1} parent=55 // pred_region
          %365 = dma.done [#allocation6], 1024
        $region68: #{tpu_custom_call.1} parent=55 // pred_fallthru
          _
        // Predicated region
        $region69: #{tpu_custom_call.1} parent=55 // pred_check
          %p366 = pneg %p196
        $region70: #{tpu_custom_call.1} parent=55 // pred_check_branch
          %368 = sbr.rel (%p366) target = $region72
        $region71: #{tpu_custom_call.1} parent=55 // pred_region
          %370 = dma.done [#allocation9], 1024
        $region72: #{tpu_custom_call.1} parent=55 // pred_fallthru
          _
        %s371 = sand.u32 %s36, 1
        %s372 = scalar_lea.sflag [#allocation3], %s371
        %s373 = sand.u32 %s36, 1
        %s374 = smul.addr %s373, 16
        %s375 = scalar_lea.vmem [#allocation2], %s374
        %p376 = pneg %p49
        %p377 = pneg %p46
        %p378 = pneg %p70
        %p379 = pneg %p67
        %p380 = pneg %p91
        %p381 = pneg %p88
        %p382 = pneg %p112
        %p383 = pneg %p109
        %p384 = pneg %p133
        %p385 = pneg %p130
        %p386 = pneg %p154
        %p387 = pneg %p151
        %p388 = pneg %p175
        %p389 = pneg %p172
        %p390 = pneg %p196
        %p391 = pneg %p193
        %p392 = pneg %p217
        %p393 = pneg %p214
        %p394 = pneg %p243
        %p395 = pneg %p240
        %s396 = sand.u32 %s230, 1
        %s397 = scalar_lea.sflag [#allocation4], %s396
        %s398 = sand.u32 %s230, 1
        %s399 = smul.addr %s398, 16
        %s400 = scalar_lea.vmem [#allocation10], %s399
        %s401 = smul.u32 2, %s28
        %s402 = smul.u32 2, %s28
        %v403 = vld [vmem:[%s350] sm:$0xff]
        %v404 = vld [vmem:[%s350 + $0x8] sm:$0xff]
        %v405 = vlaneseq
        %v406 = vand.u32 %v405, 127
        %vm407 = vcmp.lt.s32.totalorder %v406, 96
        %v408 = vsel %vm407, %v403, 0.0
        %v409 = vsel %vm407, %v404, 0.0
        %410 = vadd.xlane.f32.xlu0 %v408
        %v411 = vpop.xlane.xlu0 %410
        %412 = vadd.xlane.f32.xlu0 %v409
        %v413 = vpop.xlane.xlu0 %412
        %v414 = vmul.f32 %v411, 0.010416667
        %v415 = vmul.f32 %v413, 0.010416667
        %v416 = vsub.f32 %v403, %v414
        %v417 = vsub.f32 %v404, %v415
        %v418 = vsel %vm407, %v416, 0.0
        %v419 = vsel %vm407, %v417, 0.0
        %v420 = vmul.f32 %v418, %v418
        %v421 = vmul.f32 %v419, %v419
        %422 = vadd.xlane.f32.xlu0 %v420
        %v423 = vpop.xlane.xlu0 %422
        %424 = vadd.xlane.f32.xlu0 %v421
        %v425 = vpop.xlane.xlu0 %424
        %v426 = vmul.f32 %v423, 0.010416667
        %v427 = vmul.f32 %v425, 0.010416667
        %v428 = vadd.f32 %v426, 1e-05
        %v429 = vadd.f32 %v427, 1e-05
        %v430 = vrsqrt.pop %v428
        %v431 = vmul.f32 %v430, %v428
        %v432 = vmul.f32 %v431, %v430
        %v433 = vmul.f32 0.5, %v432
        %v434 = vsub.f32 1.5, %v433
        %v435 = vmul.f32 %v430, %v434
        %vm436 = vweird.f32 %v428
        %vm437 = vweird.f32 %v430
        %vm438 = vmor %vm436, %vm437
        %v439 = vsel %vm438, %v430, %v435
        %v440 = vrsqrt.pop %v429
        %v441 = vmul.f32 %v440, %v429
        %v442 = vmul.f32 %v441, %v440
        %v443 = vmul.f32 0.5, %v442
        %v444 = vsub.f32 1.5, %v443
        %v445 = vmul.f32 %v440, %v444
        %vm446 = vweird.f32 %v429
        %vm447 = vweird.f32 %v440
        %vm448 = vmor %vm446, %vm447
        %v449 = vsel %vm448, %v440, %v445
        %v450 = vmul.f32 %v418, %v439
        %v451 = vmul.f32 %v419, %v449
        %v452 = vld [vmem:[#allocation5] sm:$0x1]
        %v454 = vperm.slane %v452, 0
        %v456 = vmul.f32 %v450, %v454
        %v457 = vmul.f32 %v451, %v454
        %v458 = vld [vmem:[%s2] sm:$0x1]
        %v460 = vperm.slane %v458, 0
        %v462 = vadd.f32 %v456, %v460
        %v463 = vadd.f32 %v457, %v460
        %v464 = vpack.c.bf16 %v463, %v462
        %v465 = vld [vmem:[#allocation7] sm:$0xf]
        %v466 = vld [vmem:[#allocation7 + $0x4] sm:$0xf]
        %v467 = vld [vmem:[#allocation7 + $0x8] sm:$0xf]
        %v468 = vld [vmem:[#allocation7 + $0xc] sm:$0xf]
        %v469 = vld [vmem:[#allocation7 + $0x10] sm:$0xf]
        %v470 = vld [vmem:[#allocation7 + $0x14] sm:$0xf]
        %v471 = vld [vmem:[#allocation7 + $0x18] sm:$0xf]
        %v472 = vld [vmem:[#allocation7 + $0x1c] sm:$0xf]
        %v473 = vld [vmem:[#allocation7 + $0x20] sm:$0xf]
        %v474 = vld [vmem:[#allocation7 + $0x24] sm:$0xf]
        %v475 = vld [vmem:[#allocation7 + $0x28] sm:$0xf]
        %v476 = vld [vmem:[#allocation7 + $0x2c] sm:$0xf]
        %v477 = vld [vmem:[#allocation7 + $0x30] sm:$0xf]
        %v478 = vld [vmem:[#allocation7 + $0x34] sm:$0xf]
        %v479 = vld [vmem:[#allocation7 + $0x38] sm:$0xf]
        %v480 = vld [vmem:[#allocation7 + $0x3c] sm:$0xf]
        %v481 = vld [vmem:[%s4] sm:$0x1]
        %v483 = vperm.slane %v481, 0
        %v501 = vunpack.c.l.b16 %v465
        %v502 = vunpack.c.l.b16 %v466
        %v503 = vunpack.c.l.b16 %v467
        %v504 = vunpack.c.l.b16 %v468
        %v505 = vunpack.c.l.b16 %v469
        %v506 = vunpack.c.l.b16 %v470
        %v507 = vunpack.c.l.b16 %v471
        %v508 = vunpack.c.l.b16 %v472
        %v509 = vunpack.c.l.b16 %v473
        %v510 = vunpack.c.l.b16 %v474
        %v511 = vunpack.c.l.b16 %v475
        %v512 = vunpack.c.l.b16 %v476
        %v513 = vunpack.c.l.b16 %v477
        %v514 = vunpack.c.l.b16 %v478
        %v515 = vunpack.c.l.b16 %v479
        %v516 = vunpack.c.l.b16 %v480
        %v517 = vpack.c.b16 %v502, %v501
        %v518 = vpack.c.b16 %v504, %v503
        %v519 = vpack.c.b16 %v506, %v505
        %v520 = vpack.c.b16 %v508, %v507
        %v521 = vpack.c.b16 %v510, %v509
        %v522 = vpack.c.b16 %v512, %v511
        %v523 = vpack.c.b16 %v514, %v513
        %v524 = vpack.c.b16 %v516, %v515
        %533 = vmatpush.bf16.msra.mxu0 %v524
        %534 = vmatpush.bf16.msra.mxu0 %v523
        %535 = vmatpush.bf16.msra.mxu0 %v522
        %536 = vmatpush.bf16.msra.mxu0 %v521
        %537 = vmatpush.bf16.msra.mxu0 %v520
        %538 = vmatpush.bf16.msra.mxu0 %v519
        %539 = vmatpush.bf16.msra.mxu0 %v518
        %540 = vmatpush.bf16.msra.mxu0 %v517
        %541 = vmatmul.bf16.gmra.mxu0 %v464
        %v542 = vpop.f32.mrf.mxu0
        %v543 = vadd.f32 %v483, %v542
        %v544 = vpop.f32.mrf.mxu0
        %v545 = vadd.f32 %v483, %v544
        %546 = vdwg.mxu0
        %v547 = vsub.f32 0.0, %v543
        %v548 = vsub.f32 0.0, %v545
        %v549 = vmul.f32 %v547, 1.442695
        %v550 = vpow.pop %v549
        %v551 = vmul.f32 %v548, 1.442695
        %v552 = vpow.pop %v551
        %v553 = vadd.f32 %v550, 1.0
        %v554 = vadd.f32 %v552, 1.0
        %v555 = vrcp.pop %v553
        %v556 = vmul.f32 %v553, %v555
        %v557 = vsub.f32 1.0, %v556
        %v558 = vmul.f32 %v555, %v557
        %v559 = vadd.f32 %v555, %v558
        %vm560 = vweird.f32 %v553
        %vm561 = vweird.f32 %v555
        %vm562 = vmor %vm560, %vm561
        %v563 = vsel %vm562, %v555, %v559
        %v564 = vand.u32 2147483647, %v553
        %vm565 = vcmp.eq.f32.partialorder %v564, 8.507059e+37
        %v566 = vand.u32 %v553, 2147483648
        %v567 = vor.u32 1.1754944e-38, %v566
        %v568 = vsel %vm565, %v567, %v563
        %v569 = vmul.f32 1.0, %v568
        %v570 = vrcp.pop %v554
        %v571 = vmul.f32 %v554, %v570
        %v572 = vsub.f32 1.0, %v571
        %v573 = vmul.f32 %v570, %v572
        %v574 = vadd.f32 %v570, %v573
        %vm575 = vweird.f32 %v554
        %vm576 = vweird.f32 %v570
        %vm577 = vmor %vm575, %vm576
        %v578 = vsel %vm577, %v570, %v574
        %v579 = vand.u32 2147483647, %v554
        %vm580 = vcmp.eq.f32.partialorder %v579, 8.507059e+37
        %v581 = vand.u32 %v554, 2147483648
        %v582 = vor.u32 1.1754944e-38, %v581
        %v583 = vsel %vm580, %v582, %v578
        %v584 = vmul.f32 1.0, %v583
        %v585 = vmul.f32 %v543, %v569
        %v586 = vmul.f32 %v545, %v584
        %v587 = vsel %vm407, %v585, 0.0
        %v588 = vsel %vm407, %v586, 0.0
        %589 = vadd.xlane.f32.xlu0 %v587
        %v590 = vpop.xlane.xlu0 %589
        %591 = vadd.xlane.f32.xlu0 %v588
        %v592 = vpop.xlane.xlu0 %591
        %v593 = vmul.f32 %v590, 0.010416667
        %v594 = vmul.f32 %v592, 0.010416667
        %v595 = vsub.f32 %v585, %v593
        %v596 = vsub.f32 %v586, %v594
        %v597 = vsel %vm407, %v595, 0.0
        %v598 = vsel %vm407, %v596, 0.0
        %v599 = vmul.f32 %v597, %v597
        %v600 = vmul.f32 %v598, %v598
        %601 = vadd.xlane.f32.xlu0 %v599
        %v602 = vpop.xlane.xlu0 %601
        %603 = vadd.xlane.f32.xlu0 %v600
        %v604 = vpop.xlane.xlu0 %603
        %v605 = vmul.f32 %v602, 0.010416667
        %v606 = vmul.f32 %v604, 0.010416667
        %v607 = vadd.f32 %v605, 1e-05
        %v608 = vadd.f32 %v606, 1e-05
        %v609 = vrsqrt.pop %v607
        %v610 = vmul.f32 %v609, %v607
        %v611 = vmul.f32 %v610, %v609
        %v612 = vmul.f32 0.5, %v611
        %v613 = vsub.f32 1.5, %v612
        %v614 = vmul.f32 %v609, %v613
        %vm615 = vweird.f32 %v607
        %vm616 = vweird.f32 %v609
        %vm617 = vmor %vm615, %vm616
        %v618 = vsel %vm617, %v609, %v614
        %v619 = vrsqrt.pop %v608
        %v620 = vmul.f32 %v619, %v608
        %v621 = vmul.f32 %v620, %v619
        %v622 = vmul.f32 0.5, %v621
        %v623 = vsub.f32 1.5, %v622
        %v624 = vmul.f32 %v619, %v623
        %vm625 = vweird.f32 %v608
        %vm626 = vweird.f32 %v619
        %vm627 = vmor %vm625, %vm626
        %v628 = vsel %vm627, %v619, %v624
        %v629 = vmul.f32 %v597, %v618
        %v630 = vmul.f32 %v598, %v628
        %v631 = vld [vmem:[%s5] sm:$0x1]
        %v633 = vperm.slane %v631, 0
        %v635 = vmul.f32 %v629, %v633
        %v636 = vmul.f32 %v630, %v633
        %v637 = vld [vmem:[%s6] sm:$0x1]
        %v639 = vperm.slane %v637, 0
        %v641 = vadd.f32 %v635, %v639
        %v642 = vadd.f32 %v636, %v639
        %v643 = vpack.c.bf16 %v642, %v641
        %v644 = vld [vmem:[#allocation8] sm:$0xf]
        %v645 = vld [vmem:[#allocation8 + $0x4] sm:$0xf]
        %v646 = vld [vmem:[#allocation8 + $0x8] sm:$0xf]
        %v647 = vld [vmem:[#allocation8 + $0xc] sm:$0xf]
        %v648 = vld [vmem:[#allocation8 + $0x10] sm:$0xf]
        %v649 = vld [vmem:[#allocation8 + $0x14] sm:$0xf]
        %v650 = vld [vmem:[#allocation8 + $0x18] sm:$0xf]
        %v651 = vld [vmem:[#allocation8 + $0x1c] sm:$0xf]
        %v652 = vld [vmem:[#allocation8 + $0x20] sm:$0xf]
        %v653 = vld [vmem:[#allocation8 + $0x24] sm:$0xf]
        %v654 = vld [vmem:[#allocation8 + $0x28] sm:$0xf]
        %v655 = vld [vmem:[#allocation8 + $0x2c] sm:$0xf]
        %v656 = vld [vmem:[#allocation8 + $0x30] sm:$0xf]
        %v657 = vld [vmem:[#allocation8 + $0x34] sm:$0xf]
        %v658 = vld [vmem:[#allocation8 + $0x38] sm:$0xf]
        %v659 = vld [vmem:[#allocation8 + $0x3c] sm:$0xf]
        %v660 = vld [vmem:[%s8] sm:$0x1]
        %v662 = vperm.slane %v660, 0
        %v680 = vunpack.c.l.b16 %v644
        %v681 = vunpack.c.l.b16 %v645
        %v682 = vunpack.c.l.b16 %v646
        %v683 = vunpack.c.l.b16 %v647
        %v684 = vunpack.c.l.b16 %v648
        %v685 = vunpack.c.l.b16 %v649
        %v686 = vunpack.c.l.b16 %v650
        %v687 = vunpack.c.l.b16 %v651
        %v688 = vunpack.c.l.b16 %v652
        %v689 = vunpack.c.l.b16 %v653
        %v690 = vunpack.c.l.b16 %v654
        %v691 = vunpack.c.l.b16 %v655
        %v692 = vunpack.c.l.b16 %v656
        %v693 = vunpack.c.l.b16 %v657
        %v694 = vunpack.c.l.b16 %v658
        %v695 = vunpack.c.l.b16 %v659
        %v696 = vpack.c.b16 %v681, %v680
        %v697 = vpack.c.b16 %v683, %v682
        %v698 = vpack.c.b16 %v685, %v684
        %v699 = vpack.c.b16 %v687, %v686
        %v700 = vpack.c.b16 %v689, %v688
        %v701 = vpack.c.b16 %v691, %v690
        %v702 = vpack.c.b16 %v693, %v692
        %v703 = vpack.c.b16 %v695, %v694
        %712 = vmatpush.bf16.msra.mxu0 %v703
        %713 = vmatpush.bf16.msra.mxu0 %v702
        %714 = vmatpush.bf16.msra.mxu0 %v701
        %715 = vmatpush.bf16.msra.mxu0 %v700
        %716 = vmatpush.bf16.msra.mxu0 %v699
        %717 = vmatpush.bf16.msra.mxu0 %v698
        %718 = vmatpush.bf16.msra.mxu0 %v697
        %719 = vmatpush.bf16.msra.mxu0 %v696
        %720 = vmatmul.bf16.gmra.mxu0 %v643
        %v721 = vpop.f32.mrf.mxu0
        %v722 = vadd.f32 %v662, %v721
        %v723 = vpop.f32.mrf.mxu0
        %v724 = vadd.f32 %v662, %v723
        %725 = vdwg.mxu0
        %v726 = vadd.f32 %v403, %v722
        %v727 = vadd.f32 %v404, %v724
        %v728 = vsub.f32 0.0, %v726
        %v729 = vsub.f32 0.0, %v727
        %v730 = vmul.f32 %v728, 1.442695
        %v731 = vpow.pop %v730
        %v732 = vmul.f32 %v729, 1.442695
        %v733 = vpow.pop %v732
        %v734 = vadd.f32 %v731, 1.0
        %v735 = vadd.f32 %v733, 1.0
        %v736 = vrcp.pop %v734
        %v737 = vmul.f32 %v734, %v736
        %v738 = vsub.f32 1.0, %v737
        %v739 = vmul.f32 %v736, %v738
        %v740 = vadd.f32 %v736, %v739
        %vm741 = vweird.f32 %v734
        %vm742 = vweird.f32 %v736
        %vm743 = vmor %vm741, %vm742
        %v744 = vsel %vm743, %v736, %v740
        %v745 = vand.u32 2147483647, %v734
        %vm746 = vcmp.eq.f32.partialorder %v745, 8.507059e+37
        %v747 = vand.u32 %v734, 2147483648
        %v748 = vor.u32 1.1754944e-38, %v747
        %v749 = vsel %vm746, %v748, %v744
        %v750 = vmul.f32 1.0, %v749
        %v751 = vrcp.pop %v735
        %v752 = vmul.f32 %v735, %v751
        %v753 = vsub.f32 1.0, %v752
        %v754 = vmul.f32 %v751, %v753
        %v755 = vadd.f32 %v751, %v754
        %vm756 = vweird.f32 %v735
        %vm757 = vweird.f32 %v751
        %vm758 = vmor %vm756, %vm757
        %v759 = vsel %vm758, %v751, %v755
        %v760 = vand.u32 2147483647, %v735
        %vm761 = vcmp.eq.f32.partialorder %v760, 8.507059e+37
        %v762 = vand.u32 %v735, 2147483648
        %v763 = vor.u32 1.1754944e-38, %v762
        %v764 = vsel %vm761, %v763, %v759
        %v765 = vmul.f32 1.0, %v764
        %v766 = vmul.f32 %v726, %v750
        %v767 = vmul.f32 %v727, %v765
        %768 = vst [vmem:[%s400] sm:$0xff] %v766
        %769 = vst [vmem:[%s400 + $0x8] sm:$0xff] %v767
        %s770 = sand.u32 %s230, 1
        %s771 = scalar_lea.sflag [#allocation4], %s770
        %s772 = sand.u32 %s230, 1
        %s773 = smul.addr %s772, 16
        %s774 = scalar_lea.vmem [#allocation10], %s773
        // Predicated region
        $region73: #{tpu_custom_call.1} parent=55 // pred_check
          %p775 = pneg %p240
        $region74: #{tpu_custom_call.1} parent=55 // pred_check_branch
          %777 = sbr.rel (%p775) target = $region76
        $region75: #{tpu_custom_call.1} parent=55 // pred_region
          %s778 = smul.u32 2, %s28
          %780 = vsyncadd %s771, 0
          %s781 = smul.addr %s778, 8
          %s782 = scalar_lea.hbm %s9, %s781
          %s783 = sshll.u32 %s774, 4
          %s784 = int_to_ptr.vmem [resolvable:$true] %s783
          %s785 = sshll.u32 %s782, 4
          %s786 = int_to_ptr.hbm [resolvable:$true] %s785
          %791 = dma.vmem_to_hbm [thread:$0]  %s784, 256, %s786, %s771, 128, 128, 8
        $region76: #{tpu_custom_call.1} parent=55 // pred_fallthru
          _
      $region56: #{tpu_custom_call.1} parent=5 // pred_fallthru
        _
      %p792 = scmp.le.s32.totalorder 2, %s23
      // Predicated region
      $region77: #{tpu_custom_call.1} parent=5 // pred_check
        %p793 = pneg %p792
      $region78: #{tpu_custom_call.1} parent=5 // pred_check_branch
        %795 = sbr.rel (%p793) target = $region80
      $region79: #{tpu_custom_call.1} parent=5 // pred_region
        %s796 = ssub.s32 %s23, 2
        // Predicated region
        $region81: #{tpu_custom_call.1} parent=79 // pred_check
          %p797 = pneg %p246
        $region82: #{tpu_custom_call.1} parent=79 // pred_check_branch
          %799 = sbr.rel (%p797) target = $region84
        $region83: #{tpu_custom_call.1} parent=79 // pred_region
          %s800 = sand.u32 %s231, 1
          %s801 = scalar_lea.sflag [#allocation4], %s800
          %s802 = sand.u32 %s231, 1
          %s803 = smul.addr %s802, 16
          %s804 = scalar_lea.vmem [#allocation10], %s803
          %806 = dma.done %s801, 256
        $region84: #{tpu_custom_call.1} parent=79 // pred_fallthru
          _
      $region80: #{tpu_custom_call.1} parent=5 // pred_fallthru
        _
    $region6: #{tpu_custom_call.1} parent=1 // loop_footer
      %s27 = sadd.s32 1, %s23
    $region7: #{tpu_custom_call.1} parent=1 // loop_footer_branch
      %22 = sbr.rel target = $region3
    $region8: #{tpu_custom_call.1} parent=1 // loop_exit
      _
    %807 = vsyncpa [#allocation3], 1
    %s808 = scalar_lea.sflag [#allocation3], 1
    %809 = vsyncpa %s808, 1
    %810 = vsyncpa [#allocation6], 1
    %811 = vsyncpa [#allocation9], 1
    %812 = vsyncpa [#allocation4], 1
    %s813 = scalar_lea.sflag [#allocation4], 1
    %814 = vsyncpa %s813, 1

</llo_original>
